<compile_context>
chip_gen: v5e
topology: v5e:2x2
jax: 0.10.0
libtpu: 0.0.40
codegen_flags: <defaults>
</compile_context>

<pallas_src>
import functools

import jax
import jax.numpy as jnp
import numpy as np
from jax.experimental import pallas as pl
from jax.experimental.pallas import tpu as pltpu

# Target *physical* (padded, f32) bytes per input tile.  With double-buffered
# in/out plus a few f32 full-tile temporaries this stays comfortably inside
# v5e's 16 MiB scoped default and far inside the explicit limit below.
_TARGET_TILE_BYTES = 2 * 1024 * 1024
# Raise the scoped VMEM limit; 48 MiB is < v7x's 64 MiB physical VMEM and well
# under v5e/v6e's 128 MiB parts.
_VMEM_LIMIT_BYTES = 48 * 1024 * 1024


def _round_up(v, m):
    return ((int(v) + m - 1) // m) * m


def _choose_tile(extent, cap_elems, align):
    """Aligned tile size <= cap_elems; prefers >= 2 grid steps (megacore).

    If the budget cannot fit even one aligned chunk we clamp to `align`
    (cannot subdivide a lane/sublane-aligned dim further).  If the whole
    extent fits in one aligned chunk we take the full dim (always legal).
    """
    extent = int(extent)
    if extent <= align:
        return extent                                   # full dim
    cap = max(align, (int(cap_elems) // align) * align)
    half = _round_up((extent + 1) // 2, align)          # >= 2 steps for v7x
    return min(cap, half)


def _compiler_params(n_grid_axes):
    return pltpu.CompilerParams(
        dimension_semantics=("parallel",) * n_grid_axes,
        vmem_limit_bytes=_VMEM_LIMIT_BYTES)


# ----------------------------------------------------------------------------
# Shared kernel body: normalize along `axis`, one-pass moments, f32 compute.
# ----------------------------------------------------------------------------
def _ln_kernel(x_ref, w_ref, b_ref, o_ref, *, axis, eps):
    x = x_ref[...].astype(jnp.float32)
    mean = jnp.mean(x, axis=axis, keepdims=True)
    mean_sq = jnp.mean(x * x, axis=axis, keepdims=True)
    var = mean_sq - mean * mean
    inv = jax.lax.rsqrt(var + eps)                      # EUP
    y = (x - mean) * inv * w_ref[...] + b_ref[...]
    o_ref[...] = y.astype(o_ref.dtype)


# ----------------------------------------------------------------------------
# channels_last: normalize along the last dim (C)
# ----------------------------------------------------------------------------
def _layer_norm_channels_last(x, weight, bias, eps):
    orig_shape = x.shape
    C = int(orig_shape[-1])
    rows = int(np.prod(orig_shape[:-1])) if len(orig_shape) > 1 else 1
    x2 = x.reshape(rows, C)

    if C % 128 == 0:
        # C already lane-dense: keep (rows, C) layout, reduce over lanes.
        w2 = weight.reshape(1, C).astype(jnp.float32)
        b2 = bias.reshape(1, C).astype(jnp.float32)
        row_bytes = _round_up(C, 128) * 4               # padded f32 per row
        tile_rows = _choose_tile(rows, _TARGET_TILE_BYTES // row_bytes, 8)
        grid = (pl.cdiv(rows, tile_rows),)

        out2 = pl.pallas_call(
            functools.partial(_ln_kernel, axis=-1, eps=float(eps)),
            out_shape=jax.ShapeDtypeStruct((rows, C), x.dtype),
            grid_spec=pltpu.PrefetchScalarGridSpec(
                num_scalar_prefetch=0,
                grid=grid,
                in_specs=[
                    pl.BlockSpec((tile_rows, C), lambda i: (i, 0)),
                    pl.BlockSpec((1, C), lambda i: (0, 0)),
                    pl.BlockSpec((1, C), lambda i: (0, 0)),
                ],
                out_specs=pl.BlockSpec((tile_rows, C), lambda i: (i, 0)),
            ),
            compiler_params=_compiler_params(1),
        )(x2, w2, b2)
        return out2.reshape(orig_shape)

    # Small / non-128-multiple C: put `rows` on the lane axis instead so the
    # tiles are lane-dense (unmasked vst) and the VMEM block is not padded by
    # up to 32x.  Costs one wrapper-side transpose each way.
    xt = x2.T                                           # (C, rows)
    wt = weight.reshape(C, 1).astype(jnp.float32)
    bt = bias.reshape(C, 1).astype(jnp.float32)
    col_bytes = _round_up(C, 8) * 4                     # padded f32 per column
    tile_cols = _choose_tile(rows, _TARGET_TILE_BYTES // col_bytes, 128)
    grid = (pl.cdiv(rows, tile_cols),)

    outt = pl.pallas_call(
        functools.partial(_ln_kernel, axis=0, eps=float(eps)),
        out_shape=jax.ShapeDtypeStruct((C, rows), x.dtype),
        grid_spec=pltpu.PrefetchScalarGridSpec(
            num_scalar_prefetch=0,
            grid=grid,
            in_specs=[
                pl.BlockSpec((C, tile_cols), lambda j: (0, j)),
                pl.BlockSpec((C, 1), lambda j: (0, 0)),
                pl.BlockSpec((C, 1), lambda j: (0, 0)),
            ],
            out_specs=pl.BlockSpec((C, tile_cols), lambda j: (0, j)),
        ),
        compiler_params=_compiler_params(1),
    )(xt, wt, bt)
    return outt.T.reshape(orig_shape)


# ----------------------------------------------------------------------------
# channels_first: normalize along C of (N, C, H, W), x viewed as (N, C, H*W)
# ----------------------------------------------------------------------------
def _layer_norm_channels_first(x, weight, bias, eps):
    N, C, H, W = (int(d) for d in x.shape)
    HW = H * W
    x3 = x.reshape(N, C, HW)                            # free view, no transpose
    w3 = weight.reshape(1, C, 1).astype(jnp.float32)
    b3 = bias.reshape(1, C, 1).astype(jnp.float32)

    col_bytes = _round_up(C, 8) * 4                     # padded f32 per lane col
    tile_hw = _choose_tile(HW, _TARGET_TILE_BYTES // col_bytes, 128)
    per_n_bytes = col_bytes * _round_up(tile_hw, 128)
    tile_n = _choose_tile(N, max(1, _TARGET_TILE_BYTES // per_n_bytes), 1)
    grid = (pl.cdiv(N, tile_n), pl.cdiv(HW, tile_hw))

    out3 = pl.pallas_call(
        functools.partial(_ln_kernel, axis=1, eps=float(eps)),
        out_shape=jax.ShapeDtypeStruct((N, C, HW), x.dtype),
        grid_spec=pltpu.PrefetchScalarGridSpec(
            num_scalar_prefetch=0,
            grid=grid,
            in_specs=[
                pl.BlockSpec((tile_n, C, tile_hw), lambda n, j: (n, 0, j)),
                pl.BlockSpec((1, C, 1), lambda n, j: (0, 0, 0)),
                pl.BlockSpec((1, C, 1), lambda n, j: (0, 0, 0)),
            ],
            out_specs=pl.BlockSpec((tile_n, C, tile_hw), lambda n, j: (n, 0, j)),
        ),
        compiler_params=_compiler_params(2),
    )(x3, w3, b3)
    return out3.reshape(N, C, H, W)


def layer_norm(x, weight, bias, eps=1e-6, data_format="channels_last"):
    """Forward pass of the focoos LayerNorm module."""
    if data_format == "channels_last":
        return _layer_norm_channels_last(x, weight, bias, eps)
    elif data_format == "channels_first":
        return _layer_norm_channels_first(x, weight, bias, eps)
    raise NotImplementedError(data_format)


# ----------------------------------------------------------------------------
# Pure-JAX references (match the PyTorch forward)
# ----------------------------------------------------------------------------
def _ref_channels_last(x, weight, bias, eps):
    xf = x.astype(jnp.float32)
    mean = xf.mean(-1, keepdims=True)
    var = ((xf - mean) ** 2).mean(-1, keepdims=True)
    y = (xf - mean) / jnp.sqrt(var + eps) * weight + bias
    return y.astype(x.dtype)


def _ref_channels_first(x, weight, bias, eps):
    xf = x.astype(jnp.float32)
    u = xf.mean(1, keepdims=True)
    s = ((xf - u) ** 2).mean(1, keepdims=True)
    y = (xf - u) / jnp.sqrt(s + eps)
    y = weight[None, :, None, None] * y + bias[None, :, None, None]
    return y.astype(x.dtype)


if __name__ == "__main__":
    C = 4
    eps = 1e-6

    key = jax.random.PRNGKey(0)
    k_cf, k_cl, kw, kb = jax.random.split(key, 4)

    # Non-trivial affine params.
    weight = jnp.ones((C,), jnp.float32) + 0.1 * jax.random.normal(kw, (C,))
    bias = 0.1 * jax.random.normal(kb, (C,))

    # channels_first: (N, C, H, W) = (2, 4, 16, 16)
    x_cf = jax.random.normal(k_cf, (2, C, 16, 16), dtype=jnp.float32)
    out_cf = layer_norm(x_cf, weight, bias, eps, data_format="channels_first")
    out_cf = jax.block_until_ready(out_cf)
    np.testing.assert_allclose(
        np.asarray(out_cf),
        np.asarray(_ref_channels_first(x_cf, weight, bias, eps)),
        rtol=1e-5, atol=1e-5)

    # channels_last: (N, H, W, C) = (2, 16, 16, 4)
    x_cl = jax.random.normal(k_cl, (2, 16, 16, C), dtype=jnp.float32)
    out_cl = layer_norm(x_cl, weight, bias, eps, data_format="channels_last")
    out_cl = jax.block_until_ready(out_cl)
    np.testing.assert_allclose(
        np.asarray(out_cl),
        np.asarray(_ref_channels_last(x_cl, weight, bias, eps)),
        rtol=1e-5, atol=1e-5)

    print("KERNEL_OK")
</pallas_src>

<mosaic_0001>
module attributes {stable_mosaic.version = 11 : i64} {
  func.func @_ln_kernel(%arg0: i32, %arg1: i32, %arg2: memref<1x4x128xf32, #tpu.memory_space<vmem>>, %arg3: memref<1x4x1xf32, #tpu.memory_space<vmem>>, %arg4: memref<1x4x1xf32, #tpu.memory_space<vmem>>, %arg5: memref<1x4x128xf32, #tpu.memory_space<vmem>>) attributes {dimension_semantics = [#tpu.dimension_semantics<parallel>, #tpu.dimension_semantics<parallel>], iteration_bounds = array<i64: 2, 2>, scalar_prefetch = 0 : i64, scratch_operands = 0 : i64, tpu.core_type = #tpu.core_type<tc>, window_params = [{transform_indices = @transform_0, window_bounds = array<i64: 1, 4, 128>}, {pipeline_mode = #tpu.pipeline_mode<synchronous>, transform_indices = @transform_1, window_bounds = array<i64: 1, 4, 1>}, {pipeline_mode = #tpu.pipeline_mode<synchronous>, transform_indices = @transform_2, window_bounds = array<i64: 1, 4, 1>}, {transform_indices = @transform_3, window_bounds = array<i64: 1, 4, 128>}]} {
    %c0 = arith.constant 0 : index
    %c0_0 = arith.constant 0 : index
    %c0_1 = arith.constant 0 : index
    %0 = vector.load %arg2[%c0, %c0_0, %c0_1] : memref<1x4x128xf32, #tpu.memory_space<vmem>>, vector<1x4x128xf32>
    %cst = arith.constant dense<0.000000e+00> : vector<1x128xf32>
    %1 = vector.multi_reduction <add>, %0, %cst [1] : vector<1x4x128xf32> to vector<1x128xf32>
    %2 = vector.shape_cast %1 : vector<1x128xf32> to vector<1x1x128xf32>
    %cst_2 = arith.constant 4.000000e+00 : f32
    %3 = vector.broadcast %cst_2 : f32 to vector<1x1x128xf32>
    %4 = arith.divf %2, %3 : vector<1x1x128xf32>
    %5 = arith.mulf %0, %0 : vector<1x4x128xf32>
    %cst_3 = arith.constant dense<0.000000e+00> : vector<1x128xf32>
    %6 = vector.multi_reduction <add>, %5, %cst_3 [1] : vector<1x4x128xf32> to vector<1x128xf32>
    %7 = vector.shape_cast %6 : vector<1x128xf32> to vector<1x1x128xf32>
    %cst_4 = arith.constant 4.000000e+00 : f32
    %8 = vector.broadcast %cst_4 : f32 to vector<1x1x128xf32>
    %9 = arith.divf %7, %8 : vector<1x1x128xf32>
    %10 = arith.mulf %4, %4 : vector<1x1x128xf32>
    %11 = arith.subf %9, %10 : vector<1x1x128xf32>
    %cst_5 = arith.constant 9.99999997E-7 : f32
    %12 = vector.broadcast %cst_5 : f32 to vector<1x1x128xf32>
    %13 = arith.addf %11, %12 : vector<1x1x128xf32>
    %14 = math.rsqrt %13 : vector<1x1x128xf32>
    %15 = vector.broadcast %4 : vector<1x1x128xf32> to vector<1x4x128xf32>
    %16 = arith.subf %0, %15 : vector<1x4x128xf32>
    %17 = vector.broadcast %14 : vector<1x1x128xf32> to vector<1x4x128xf32>
    %18 = arith.mulf %16, %17 : vector<1x4x128xf32>
    %c0_6 = arith.constant 0 : index
    %c0_7 = arith.constant 0 : index
    %c0_8 = arith.constant 0 : index
    %19 = vector.load %arg3[%c0_6, %c0_7, %c0_8] : memref<1x4x1xf32, #tpu.memory_space<vmem>>, vector<1x4x1xf32>
    %20 = vector.broadcast %19 : vector<1x4x1xf32> to vector<1x4x128xf32>
    %21 = arith.mulf %18, %20 : vector<1x4x128xf32>
    %c0_9 = arith.constant 0 : index
    %c0_10 = arith.constant 0 : index
    %c0_11 = arith.constant 0 : index
    %22 = vector.load %arg4[%c0_9, %c0_10, %c0_11] : memref<1x4x1xf32, #tpu.memory_space<vmem>>, vector<1x4x1xf32>
    %23 = vector.broadcast %22 : vector<1x4x1xf32> to vector<1x4x128xf32>
    %24 = arith.addf %21, %23 : vector<1x4x128xf32>
    %c0_12 = arith.constant 0 : index
    %c0_13 = arith.constant 0 : index
    %c0_14 = arith.constant 0 : index
    %25 = vector.load %arg5[%c0_12, %c0_13, %c0_14] : memref<1x4x128xf32, #tpu.memory_space<vmem>>, vector<1x4x128xf32>
    tpu.vector_store %arg5[%c0_12, %c0_13, %c0_14], %24 {strides = array<i32>} : memref<1x4x128xf32, #tpu.memory_space<vmem>>, vector<1x4x128xf32>,
    return
  }
  func.func @transform_0(%arg0: i32, %arg1: i32) -> (i32, i32, i32) {
    %c0_i32 = arith.constant 0 : i32
    %c0_i32_0 = arith.constant 0 : i32
    return %arg0, %c0_i32, %arg1 : i32, i32, i32
  }
  func.func @transform_1(%arg0: i32, %arg1: i32) -> (i32, i32, i32) {
    %c0_i32 = arith.constant 0 : i32
    %c0_i32_0 = arith.constant 0 : i32
    %c0_i32_1 = arith.constant 0 : i32
    %c0_i32_2 = arith.constant 0 : i32
    return %c0_i32, %c0_i32_0, %c0_i32_1 : i32, i32, i32
  }
  func.func @transform_2(%arg0: i32, %arg1: i32) -> (i32, i32, i32) {
    %c0_i32 = arith.constant 0 : i32
    %c0_i32_0 = arith.constant 0 : i32
    %c0_i32_1 = arith.constant 0 : i32
    %c0_i32_2 = arith.constant 0 : i32
    return %c0_i32, %c0_i32_0, %c0_i32_1 : i32, i32, i32
  }
  func.func @transform_3(%arg0: i32, %arg1: i32) -> (i32, i32, i32) {
    %c0_i32 = arith.constant 0 : i32
    %c0_i32_0 = arith.constant 0 : i32
    return %arg0, %c0_i32, %arg1 : i32, i32, i32
  }
}

</mosaic_0001>

<llo_original>
// kernel: tpu_custom_call.1
$region0: #{tpu_custom_call.1}
  #allocation0 [shape = 'u32[]', space=smem, size = 0x4, offset = 0x4, fixed_abs, tag = 'smem constant byte address 0x4 - core index']
  #allocation1 [shape = 'u32[72,128]{1,0:T(1,128)}', space=vmem, size = 0x9000, scoped, tag = 'internal scratch']
  %s0 = inlined_call_operand.hbm [shape: f32[2,4,256], index: 0, kind: input, shape index: {}]
  %s1 = inlined_call_operand.vmem [shape: f32[1,4,1], index: 1, kind: input, shape index: {}]
  %s2 = inlined_call_operand.vmem [shape: f32[1,4,1], index: 2, kind: input, shape index: {}]
  %s3 = inlined_call_operand.hbm [shape: f32[2,4,256], index: 3, kind: output, shape index: {}]
  %s4 = sld [smem:[#allocation0]]
  $region49: #{tpu_custom_call.1} parent=0
    _
  %s6 = ssub.s32 1, %s4
  %s7 = scalar_select 0, %s6, %s4
  $region1: #{tpu_custom_call.1} parent=0
    #allocation2 [shape = 'u8[4096]{0}', space=vmem, size = 0x1000, scoped, tag = 'input window, operand 0']
    #allocation3 [shape = 's32[2]{0}', space=sflag, size = 0x8, scoped, tag = 'scoped memory for tpu_custom_call.1']
    #allocation4 [shape = 's32[2]{0}', space=sflag, size = 0x8, scoped, tag = 'scoped memory for tpu_custom_call.1']
    #allocation5 [shape = 'u8[4096]{0}', space=vmem, size = 0x1000, scoped, tag = 'output window, operand 0']
    %8 = vsyncpa [#allocation3], 0
    %s9 = scalar_lea.sflag [#allocation3], 1
    %10 = vsyncpa %s9, 0
    %11 = vsyncpa [#allocation4], 0
    %s12 = scalar_lea.sflag [#allocation4], 1
    %13 = vsyncpa %s12, 0
    loop: start=0, step=1, limit=6
    $region2: #{tpu_custom_call.1} parent=1 // loop_pre_header
      _
    $region3: #{tpu_custom_call.1} parent=1 // loop_header
      %s15 = sphi 0, %s19
      %p16 = scmp.ge.s32.totalorder %s15, 6
      %s22 = sphi 0, %s34
      %s23 = sphi 0, %s30
      %s24 = sphi 0, %s22
      %s25 = sphi 0, %s23
      %s26 = sphi 0, %s24
      %s27 = sphi 0, %s25
      %s39 = sphi 0, %s41
      %s42 = sphi 0, %s39
      %s43 = sphi 0, %s42
      %s59 = sphi 0, %s43
      %s63 = sphi 0, %s63
      %s65 = sphi 0, %s63
      %s66 = sphi 0, %s65
      %s80 = sphi 0, %s66
      %s84 = sphi 0, %s84
      %s86 = sphi 0, %s84
      %s87 = sphi 0, %s86
      %s101 = sphi 0, %s87
      %s109 = sphi 0, %s111
      %s112 = sphi 0, %s109
      %s113 = sphi 0, %s112
      %s129 = sphi 0, %s113
    $region4: #{tpu_custom_call.1} parent=1 // loop_header_branch
      %18 = sbr.rel (%p16) target = $region8
    $region5: #{tpu_custom_call.1} parent=1 // loop_body
      %s20 = ssub.s32 %s15, 1
      %s21 = ssub.s32 %s15, 2
      %s28 = sadd.s32 1, %s23
      %p29 = scmp.ge.s32.totalorder %s28, 2
      %s30 = scalar_select %p29, 0, %s28
      %s31 = sadd.s32 1, %s22
      %s32 = scalar_select %p29, %s31, %s22
      %p33 = scmp.ge.s32.totalorder %s32, 2
      %s34 = scalar_select %p33, 0, %s32
      %s35 = ssub.s32 %s22, %s34
      %s36 = ssub.s32 %s23, %s30
      %s37 = sor.u32 %s35, %s36
      %p38 = scmp.eq.s32.totalorder %s37, 0
      %s40 = sadd.s32 %s39, 1
      %s41 = scalar_select %p38, %s39, %s40
      %p44 = pneg %p38
      %p45 = scmp.eq.s32.totalorder %s15, 3
      %p46 = por %p44, %p45
      %p47 = scmp.ne.s32.totalorder %s39, %s42
      %p48 = scmp.eq.s32.totalorder %s15, 0
      %p49 = por %p47, %p48
      %p50 = scmp.ne.s32.totalorder %s39, %s42
      %p51 = scmp.eq.s32.totalorder %s20, 3
      %p52 = por %p50, %p51
      %p53 = scmp.ne.s32.totalorder %s42, %s43
      %p54 = scmp.eq.s32.totalorder %s20, 0
      %p55 = por %p53, %p54
      %p56 = scmp.ne.s32.totalorder %s42, %s43
      %p57 = scmp.eq.s32.totalorder %s21, 3
      %p58 = por %p56, %p57
      %p60 = scmp.ne.s32.totalorder %s43, %s59
      %p61 = scmp.eq.s32.totalorder %s21, 0
      %p62 = por %p60, %p61
      %s64 = sadd.s32 %s63, 1
      %p67 = scmp.eq.s32.totalorder %s15, 3
      %p68 = scmp.ne.s32.totalorder %s63, %s65
      %p69 = scmp.eq.s32.totalorder %s15, 0
      %p70 = por %p68, %p69
      %p71 = scmp.ne.s32.totalorder %s63, %s65
      %p72 = scmp.eq.s32.totalorder %s20, 3
      %p73 = por %p71, %p72
      %p74 = scmp.ne.s32.totalorder %s65, %s66
      %p75 = scmp.eq.s32.totalorder %s20, 0
      %p76 = por %p74, %p75
      %p77 = scmp.ne.s32.totalorder %s65, %s66
      %p78 = scmp.eq.s32.totalorder %s21, 3
      %p79 = por %p77, %p78
      %p81 = scmp.ne.s32.totalorder %s66, %s80
      %p82 = scmp.eq.s32.totalorder %s21, 0
      %p83 = por %p81, %p82
      %s85 = sadd.s32 %s84, 1
      %p88 = scmp.eq.s32.totalorder %s15, 3
      %p89 = scmp.ne.s32.totalorder %s84, %s86
      %p90 = scmp.eq.s32.totalorder %s15, 0
      %p91 = por %p89, %p90
      %p92 = scmp.ne.s32.totalorder %s84, %s86
      %p93 = scmp.eq.s32.totalorder %s20, 3
      %p94 = por %p92, %p93
      %p95 = scmp.ne.s32.totalorder %s86, %s87
      %p96 = scmp.eq.s32.totalorder %s20, 0
      %p97 = por %p95, %p96
      %p98 = scmp.ne.s32.totalorder %s86, %s87
      %p99 = scmp.eq.s32.totalorder %s21, 3
      %p100 = por %p98, %p99
      %p102 = scmp.ne.s32.totalorder %s87, %s101
      %p103 = scmp.eq.s32.totalorder %s21, 0
      %p104 = por %p102, %p103
      %s105 = ssub.s32 %s22, %s34
      %s106 = ssub.s32 %s23, %s30
      %s107 = sor.u32 %s105, %s106
      %p108 = scmp.eq.s32.totalorder %s107, 0
      %s110 = sadd.s32 %s109, 1
      %s111 = scalar_select %p108, %s109, %s110
      %p114 = pneg %p108
      %p115 = scmp.eq.s32.totalorder %s15, 3
      %p116 = por %p114, %p115
      %p117 = scmp.ne.s32.totalorder %s109, %s112
      %p118 = scmp.eq.s32.totalorder %s15, 0
      %p119 = por %p117, %p118
      %p120 = scmp.ne.s32.totalorder %s109, %s112
      %p121 = scmp.eq.s32.totalorder %s20, 3
      %p122 = por %p120, %p121
      %p123 = scmp.ne.s32.totalorder %s112, %s113
      %p124 = scmp.eq.s32.totalorder %s20, 0
      %p125 = por %p123, %p124
      %p126 = scmp.ne.s32.totalorder %s112, %s113
      %p127 = scmp.eq.s32.totalorder %s21, 3
      %p128 = por %p126, %p127
      %p130 = scmp.ne.s32.totalorder %s113, %s129
      %p131 = scmp.eq.s32.totalorder %s21, 0
      %p132 = por %p130, %p131
      %p133 = scmp.le.s32.totalorder 1, %s15
      %p134 = scmp.lt.s32.totalorder %s15, 5
      %p135 = pnand %p133, %p134
      %p136 = pneg %p135
      // Predicated region
      $region9: #{tpu_custom_call.1} parent=5 // pred_check
        _
      $region10: #{tpu_custom_call.1} parent=5 // pred_check_branch
        %138 = sbr.rel (%p135) target = $region12
      $region11: #{tpu_custom_call.1} parent=5 // pred_region
        %s139 = ssub.s32 %s15, 1
        // Predicated region
        $region13: #{tpu_custom_call.1} parent=11 // pred_check
          %p140 = pneg %p76
        $region14: #{tpu_custom_call.1} parent=11 // pred_check_branch
          %142 = sbr.rel (%p140) target = $region16
        $region15: #{tpu_custom_call.1} parent=11 // pred_region
          _
        $region16: #{tpu_custom_call.1} parent=11 // pred_fallthru
          _
        // Predicated region
        $region17: #{tpu_custom_call.1} parent=11 // pred_check
          %p143 = pneg %p97
        $region18: #{tpu_custom_call.1} parent=11 // pred_check_branch
          %145 = sbr.rel (%p143) target = $region20
        $region19: #{tpu_custom_call.1} parent=11 // pred_region
          _
        $region20: #{tpu_custom_call.1} parent=11 // pred_fallthru
          _
      $region12: #{tpu_custom_call.1} parent=5 // pred_fallthru
        _
      %p146 = scmp.lt.s32.totalorder %s15, 4
      // Predicated region
      $region21: #{tpu_custom_call.1} parent=5 // pred_check
        %p147 = pneg %p146
      $region22: #{tpu_custom_call.1} parent=5 // pred_check_branch
        %149 = sbr.rel (%p147) target = $region24
      $region23: #{tpu_custom_call.1} parent=5 // pred_region
        // Predicated region
        $region25: #{tpu_custom_call.1} parent=23 // pred_check
          %p150 = pneg %p49
        $region26: #{tpu_custom_call.1} parent=23 // pred_check_branch
          %152 = sbr.rel (%p150) target = $region28
        $region27: #{tpu_custom_call.1} parent=23 // pred_region
          %s153 = sand.u32 %s39, 1
          %s154 = scalar_lea.sflag [#allocation3], %s153
          %s155 = sand.u32 %s39, 1
          %s156 = smul.addr %s155, 4
          %s157 = scalar_lea.vmem [#allocation2], %s156
          %159 = vsyncadd %s154, 0
          %s160 = smul.addr %s22, 2
          %s161 = sadd.s32 %s23, %s160
          %s162 = smul.addr %s161, 4
          %s163 = scalar_lea.hbm %s0, %s162
          %s165 = sshll.u32 %s163, 4
          %s166 = int_to_ptr.hbm [resolvable:$true] %s165
          %s167 = sshll.u32 %s157, 4
          %s168 = int_to_ptr.vmem [resolvable:$true] %s167
          %170 = dma.hbm_to_vmem [thread:$0]  %s166, 64, %s168, %s154
        $region28: #{tpu_custom_call.1} parent=23 // pred_fallthru
          _
      $region24: #{tpu_custom_call.1} parent=5 // pred_fallthru
        _
      %p171 = scmp.le.s32.totalorder 1, %s15
      %p172 = scmp.lt.s32.totalorder %s15, 5
      %p173 = pnand %p171, %p172
      %p174 = pneg %p173
      // Predicated region
      $region29: #{tpu_custom_call.1} parent=5 // pred_check
        _
      $region30: #{tpu_custom_call.1} parent=5 // pred_check_branch
        %176 = sbr.rel (%p173) target = $region32
      $region31: #{tpu_custom_call.1} parent=5 // pred_region
        %s177 = ssub.s32 %s15, 1
        %s178 = sand.u32 %s42, 1
        %s179 = scalar_lea.sflag [#allocation3], %s178
        %s180 = sand.u32 %s42, 1
        %s181 = smul.addr %s180, 4
        %s182 = scalar_lea.vmem [#allocation2], %s181
        // Predicated region
        $region33: #{tpu_custom_call.1} parent=31 // pred_check
          %p183 = pneg %p55
        $region34: #{tpu_custom_call.1} parent=31 // pred_check_branch
          %185 = sbr.rel (%p183) target = $region36
        $region35: #{tpu_custom_call.1} parent=31 // pred_region
          %187 = dma.done %s179, 64
        $region36: #{tpu_custom_call.1} parent=31 // pred_fallthru
          _
        %s188 = sand.u32 %s42, 1
        %s189 = scalar_lea.sflag [#allocation3], %s188
        %s190 = sand.u32 %s42, 1
        %s191 = smul.addr %s190, 4
        %s192 = scalar_lea.vmem [#allocation2], %s191
        %p193 = pneg %p55
        %p194 = pneg %p52
        %p195 = pneg %p76
        %p196 = pneg %p73
        %p197 = pneg %p97
        %p198 = pneg %p94
        %p199 = pneg %p125
        %p200 = pneg %p122
        %s201 = sand.u32 %s112, 1
        %s202 = scalar_lea.sflag [#allocation4], %s201
        %s203 = sand.u32 %s112, 1
        %s204 = smul.addr %s203, 4
        %s205 = scalar_lea.vmem [#allocation5], %s204
        %v206 = vld [vmem:[%s182] sm:$0xf]
        %vm207 = vcmask 1043456
        %v208 = vsel %vm207, %v206, 0.0
        %v209 = vrot.slane %v208, 4
        %v210 = vadd.f32 %v208, %v209
        %v211 = vrot.slane %v210, 2
        %v212 = vadd.f32 %v210, %v211
        %v213 = vrot.slane %v212, 1
        %v214 = vadd.f32 %v212, %v213
        %v215 = vrcp.pop 4.0
        %v216 = vmul.f32 4.0, %v215
        %v217 = vsub.f32 1.0, %v216
        %v218 = vmul.f32 %v215, %v217
        %v219 = vadd.f32 %v215, %v218
        %vm220 = vweird.f32 %v215
        %v221 = vsel %vm220, %v215, %v219
        %v222 = vmul.f32 %v214, %v221
        %v223 = vmul.f32 %v206, %v206
        %v224 = vsel %vm207, %v223, 0.0
        %v225 = vrot.slane %v224, 4
        %v226 = vadd.f32 %v224, %v225
        %v227 = vrot.slane %v226, 2
        %v228 = vadd.f32 %v226, %v227
        %v229 = vrot.slane %v228, 1
        %v230 = vadd.f32 %v228, %v229
        %v231 = vmul.f32 %v230, %v221
        %v232 = vmul.f32 %v222, %v222
        %v233 = vsub.f32 %v231, %v232
        %v234 = vadd.f32 %v233, 1e-06
        %v235 = vrsqrt.pop %v234
        %v236 = vmul.f32 %v235, %v234
        %v237 = vmul.f32 %v236, %v235
        %v238 = vmul.f32 0.5, %v237
        %v239 = vsub.f32 1.5, %v238
        %v240 = vmul.f32 %v235, %v239
        %vm241 = vweird.f32 %v234
        %vm242 = vweird.f32 %v235
        %vm243 = vmor %vm241, %vm242
        %v244 = vsel %vm243, %v235, %v240
        %v245 = vsub.f32 %v206, %v222
        %v246 = vmul.f32 %v245, %v244
        %v247 = vld [vmem:[%s1] sm:$0xf]
        %249 = vset.pattern.permute.xlu0 0
        %250 = vperm.xlu0 %249, %v247
        %v251 = vpop.permute.xlu0 %250
        %v253 = vmul.f32 %v246, %v251
        %v254 = vld [vmem:[%s2] sm:$0xf]
        %256 = vset.pattern.permute.xlu0 0
        %257 = vperm.xlu0 %256, %v254
        %v258 = vpop.permute.xlu0 %257
        %v260 = vadd.f32 %v253, %v258
        %261 = vst [vmem:[%s205] sm:$0xf] %v260
        %s262 = sand.u32 %s112, 1
        %s263 = scalar_lea.sflag [#allocation4], %s262
        %s264 = sand.u32 %s112, 1
        %s265 = smul.addr %s264, 4
        %s266 = scalar_lea.vmem [#allocation5], %s265
        // Predicated region
        $region37: #{tpu_custom_call.1} parent=31 // pred_check
          %p267 = pneg %p122
        $region38: #{tpu_custom_call.1} parent=31 // pred_check_branch
          %269 = sbr.rel (%p267) target = $region40
        $region39: #{tpu_custom_call.1} parent=31 // pred_region
          %271 = vsyncadd %s263, 0
          %s272 = smul.addr %s24, 2
          %s273 = sadd.s32 %s25, %s272
          %s274 = smul.addr %s273, 4
          %s275 = scalar_lea.hbm %s3, %s274
          %s277 = sshll.u32 %s266, 4
          %s278 = int_to_ptr.vmem [resolvable:$true] %s277
          %s279 = sshll.u32 %s275, 4
          %s280 = int_to_ptr.hbm [resolvable:$true] %s279
          %282 = dma.vmem_to_hbm [thread:$0]  %s278, 64, %s280, %s263
        $region40: #{tpu_custom_call.1} parent=31 // pred_fallthru
          _
      $region32: #{tpu_custom_call.1} parent=5 // pred_fallthru
        _
      %p283 = scmp.le.s32.totalorder 2, %s15
      // Predicated region
      $region41: #{tpu_custom_call.1} parent=5 // pred_check
        %p284 = pneg %p283
      $region42: #{tpu_custom_call.1} parent=5 // pred_check_branch
        %286 = sbr.rel (%p284) target = $region44
      $region43: #{tpu_custom_call.1} parent=5 // pred_region
        %s287 = ssub.s32 %s15, 2
        // Predicated region
        $region45: #{tpu_custom_call.1} parent=43 // pred_check
          %p288 = pneg %p128
        $region46: #{tpu_custom_call.1} parent=43 // pred_check_branch
          %290 = sbr.rel (%p288) target = $region48
        $region47: #{tpu_custom_call.1} parent=43 // pred_region
          %s291 = sand.u32 %s113, 1
          %s292 = scalar_lea.sflag [#allocation4], %s291
          %s293 = sand.u32 %s113, 1
          %s294 = smul.addr %s293, 4
          %s295 = scalar_lea.vmem [#allocation5], %s294
          %297 = dma.done %s292, 64
        $region48: #{tpu_custom_call.1} parent=43 // pred_fallthru
          _
      $region44: #{tpu_custom_call.1} parent=5 // pred_fallthru
        _
    $region6: #{tpu_custom_call.1} parent=1 // loop_footer
      %s19 = sadd.s32 1, %s15
    $region7: #{tpu_custom_call.1} parent=1 // loop_footer_branch
      %14 = sbr.rel target = $region3
    $region8: #{tpu_custom_call.1} parent=1 // loop_exit
      _
    %298 = vsyncpa [#allocation3], 1
    %s299 = scalar_lea.sflag [#allocation3], 1
    %300 = vsyncpa %s299, 1
    %301 = vsyncpa [#allocation4], 1
    %s302 = scalar_lea.sflag [#allocation4], 1
    %303 = vsyncpa %s302, 1

</llo_original>
